<compile_context>
chip_gen: v7x
topology: tpu7x:2x2x1
jax: 0.10.0
libtpu: 0.0.40
codegen_flags: <defaults>
</compile_context>

<pallas_src>
import functools

import jax
import jax.numpy as jnp
from jax import lax
from jax.experimental import pallas as pl
from jax.experimental.pallas import tpu as pltpu


_GRAM_DIMS = (((0,), (0,)), ((), ()))   # contract dim 0 of both operands


def _round_up(x: int, m: int) -> int:
    return (x + m - 1) // m * m


def _coral_kernel(fs_ref, ft_ref, out_ref, msum_ref, mcol_ref, sdiff_ref, *,
                  n_rows: int, d_true: int, tb: int, mm_dtype,
                  need_mask: bool):
    i = pl.program_id(0)
    last = pl.num_programs(0) - 1

    @pl.when(i == 0)
    def _init():
        msum_ref[...] = jnp.zeros_like(msum_ref)
        sdiff_ref[...] = jnp.zeros_like(sdiff_ref)

    fs = fs_ref[...]          # (tb, Dp), native dtype
    ft = ft_ref[...]

    def accumulate(fs_v, ft_v):
        # Row sums in f32 -- cheap VALU work that hides under the MXU time.
        msum_ref[0:1, :] += jnp.sum(fs_v.astype(jnp.float32), axis=0,
                                    keepdims=True)
        msum_ref[1:2, :] += jnp.sum(ft_v.astype(jnp.float32), axis=0,
                                    keepdims=True)

        # One fused MXU pass: [fs; -ft]^T @ [fs; ft] == fs^T fs - ft^T ft,
        # accumulated straight into the single DxD f32 accumulator (no
        # per-step Dp^2 elementwise subtract).
        a = fs_v.astype(mm_dtype)
        b = ft_v.astype(mm_dtype)
        stack_u = jnp.concatenate([a, b], axis=0)        # (2*tb, Dp)
        stack_s = jnp.concatenate([a, -b], axis=0)       # (2*tb, Dp)
        sdiff_ref[...] += lax.dot_general(
            stack_s, stack_u, _GRAM_DIMS, preferred_element_type=jnp.float32)

    if need_mask:
        # Interior tiles are full: skip the mask entirely (zero VPU overhead).
        @pl.when(i < last)
        def _interior():
            accumulate(fs, ft)

        # Ragged last tile: rows past the true batch contain unspecified data
        # (the batch axis is not padded in HBM) -- zero them before use.
        @pl.when(i == last)
        def _ragged_tail():
            rows = i * tb + lax.broadcasted_iota(jnp.int32, fs.shape, 0)
            keep = rows < n_rows
            accumulate(jnp.where(keep, fs, jnp.zeros_like(fs)),
                       jnp.where(keep, ft, jnp.zeros_like(ft)))
    else:
        accumulate(fs, ft)

    @pl.when(i == last)
    def _finalize():
        d_pad = sdiff_ref.shape[0]
        inv_n = jnp.float32(1.0 / n_rows)
        n_f = jnp.float32(n_rows)

        m_s = msum_ref[0:1, :] * inv_n            # (1, Dp) row-layout means
        m_t = msum_ref[1:2, :] * inv_n
        md = m_s - m_t
        mean_diff = jnp.sum(md * md) * jnp.float32(1.0 / d_true)

        # Column-layout means via a tiny identity matmul ("MXU transpose"):
        # mcol[:, 0] = mean_s, mcol[:, 1] = mean_t, other columns are zero.
        r8 = lax.broadcasted_iota(jnp.int32, (8, 8), 0)
        c8 = lax.broadcasted_iota(jnp.int32, (8, 8), 1)
        eye8 = (r8 == c8).astype(jnp.float32)
        mcol_ref[...] = lax.dot_general(
            msum_ref[...], eye8, _GRAM_DIMS,
            preferred_element_type=jnp.float32) * inv_n        # (Dp, 8)

        # cov_s - cov_t = (S_diff - N*(m_s^T m_s - m_t^T m_t)) / (N - 1).
        # Accumulate sum((cov_s - cov_t)^2) over 128-row chunks of the DxD
        # accumulator so finalize temporaries stay O(128 * Dp), not O(Dp^2).
        chunk = 128

        def body(ci, acc):
            r0 = pl.multiple_of(ci * chunk, chunk)
            sd = sdiff_ref[pl.ds(r0, chunk), :]                 # (chunk, Dp)
            ms_c = mcol_ref[pl.ds(r0, chunk), 0:1]              # (chunk, 1)
            mt_c = mcol_ref[pl.ds(r0, chunk), 1:2]
            cn = sd - n_f * (ms_c * m_s - mt_c * m_t)
            return acc + jnp.sum(cn * cn, keepdims=True)

        sq = lax.fori_loop(0, d_pad // chunk, body,
                           jnp.zeros((1, 1), jnp.float32))

        # Fold 1/(N-1)^2 and 1/D^2 (elementwise means) into one scalar.
        cov_scale = jnp.float32(
            1.0 / (float(n_rows - 1) ** 2 * float(d_true) ** 2))
        out_ref[0, 0] = mean_diff + sq[0, 0] * cov_scale


def _vmem_capacity_bytes() -> int:
    """Per-core VMEM capacity; conservative fallback if the query fails."""
    try:
        cap = getattr(pltpu.get_tpu_info(), "vmem_capacity_bytes", None)
        if cap:
            return int(cap)
    except Exception:  # pragma: no cover (interpret mode / no TPU visible)
        pass
    return 64 << 20    # v7x per-TensorCore VMEM (smallest across v5e/v6e/v7x)


def _vmem_needed(tb: int, dp: int, in_item: int, mm_item: int) -> int:
    acc = dp * dp * 4                       # S_diff accumulator
    mm_tmp = dp * dp * 4                    # matmul result before the +=
    sums = 8 * dp * 4 + dp * 128 * 4        # row-layout sums + col-layout means
    inputs = 2 * 2 * tb * dp * in_item      # double-buffered fs / ft tiles
    stacks = 2 * 2 * tb * dp * mm_item      # signed / unsigned stacked operands
    step_tmp = 2 * tb * dp * 4              # f32 casts for sums / tail masks
    fin_tmp = 3 * 128 * dp * 4              # chunked finalize temporaries
    return acc + mm_tmp + sums + inputs + stacks + step_tmp + fin_tmp


def _pick_tb(batch: int, dp: int, in_item: int, mm_item: int,
             budget: int) -> int:
    min_item = min(in_item, mm_item)
    if min_item >= 4:
        align, tb_max = 8, 512
    elif min_item == 2:
        align, tb_max = 16, 1024          # bf16 packs 16 rows per vreg
    else:
        align, tb_max = 32, 1024
    tb = _round_up(min(max(batch, 1), tb_max), align)
    # Balance chunks so the ragged tail is small without adding grid steps.
    n_steps = -(-batch // tb)
    tb = _round_up(-(-batch // n_steps), align)
    # Shrink (doubling the step count) until the working set fits VMEM.
    while tb > align and _vmem_needed(tb, dp, in_item, mm_item) > budget:
        tb = max(align, _round_up(tb // 2, align))
    return tb


def correlation_alignment_loss(f_s: jax.Array, f_t: jax.Array, *,
                               matmul_dtype=None) -> jax.Array:
    """Pallas TPU implementation of CorrelationAlignmentLoss.forward."""
    assert f_s.ndim == 2 and f_t.ndim == 2, "expected (batch, features)"
    assert f_s.shape == f_t.shape, "source/target shapes must match"
    assert f_s.shape[0] >= 2, "need at least 2 samples for covariance"

    dtype = jnp.promote_types(f_s.dtype, f_t.dtype)
    f_s = f_s.astype(dtype)
    f_t = f_t.astype(dtype)
    B, D = f_s.shape

    mm_dtype = jnp.dtype(matmul_dtype) if matmul_dtype is not None \
        else jnp.dtype(dtype)
    in_item = jnp.dtype(dtype).itemsize
    mm_item = mm_dtype.itemsize

    # Lane-pad only the feature axis, and only when required.  The batch axis
    # is handled with an in-kernel mask on the ragged last tile instead of an
    # HBM round trip through jnp.pad.
    Dp = _round_up(D, 128)
    if Dp != D:
        f_s = jnp.pad(f_s, ((0, 0), (0, Dp - D)))
        f_t = jnp.pad(f_t, ((0, 0), (0, Dp - D)))

    cap = _vmem_capacity_bytes()
    budget = max(cap - (4 << 20), 16 << 20)
    tb = _pick_tb(B, Dp, in_item, mm_item, budget)
    needed = _vmem_needed(tb, Dp, in_item, mm_item)
    if needed > budget:
        # TODO(synk): 2-D covariance-tiled grid (output tiles over the DxD
        # accumulator, batch innermost) for feature dims whose accumulator
        # does not fit per-core VMEM (~Dp > 2.5k on v7x).
        raise NotImplementedError(
            f"feature dim {D} needs ~{needed >> 20} MiB VMEM; the single-"
            "accumulator streaming kernel does not fit this TPU's VMEM")
    vmem_limit = int(min(cap, max(needed + (8 << 20), 32 << 20)))

    num_steps = -(-B // tb)
    need_mask = (B % tb) != 0

    kernel = functools.partial(
        _coral_kernel, n_rows=B, d_true=D, tb=tb, mm_dtype=mm_dtype,
        need_mask=need_mask)

    # TODO(synk): on v7x, split the batch chunks across the 2 TensorCores
    # (leading "parallel" axis + per-core partial S_diff) for ~2x on
    # compute-bound shapes; kept single-core here.
    out = pl.pallas_call(
        kernel,
        out_shape=jax.ShapeDtypeStruct((1, 1), jnp.float32),
        grid_spec=pltpu.PrefetchScalarGridSpec(
            num_scalar_prefetch=0,
            grid=(num_steps,),
            in_specs=[
                pl.BlockSpec((tb, Dp), lambda i: (i, 0)),
                pl.BlockSpec((tb, Dp), lambda i: (i, 0)),
            ],
            out_specs=pl.BlockSpec((1, 1), lambda i: (0, 0),
                                   memory_space=pltpu.MemorySpace.SMEM),
            scratch_shapes=[
                pltpu.VMEM((8, Dp), jnp.float32),    # row sums (rows 0 / 1)
                pltpu.VMEM((Dp, 8), jnp.float32),    # column-layout means
                pltpu.VMEM((Dp, Dp), jnp.float32),   # fused Gram difference
            ],
        ),
        compiler_params=pltpu.CompilerParams(
            dimension_semantics=("arbitrary",),      # batch axis is a reduction
            vmem_limit_bytes=vmem_limit,
        ),
    )(f_s, f_t)
    return out[0, 0]


def _reference(f_s, f_t):
    f_s = f_s.astype(jnp.float32)
    f_t = f_t.astype(jnp.float32)
    mean_s = f_s.mean(0, keepdims=True)
    mean_t = f_t.mean(0, keepdims=True)
    cent_s = f_s - mean_s
    cent_t = f_t - mean_t
    cov_s = cent_s.T @ cent_s / (f_s.shape[0] - 1)
    cov_t = cent_t.T @ cent_t / (f_t.shape[0] - 1)
    mean_diff = jnp.mean((mean_s - mean_t) ** 2)
    cov_diff = jnp.mean((cov_s - cov_t) ** 2)
    return mean_diff + cov_diff


if __name__ == "__main__":
    key = jax.random.PRNGKey(0)
    k1, k2, k3, k4, k5, k6 = jax.random.split(key, 6)

    # Small shape consistent with the module's (batch, feature) inputs.
    B, D = 8, 32
    f_s = jax.random.normal(k1, (B, D), dtype=jnp.float32)
    f_t = jax.random.normal(k2, (B, D), dtype=jnp.float32) * 1.5 + 0.3
    loss = correlation_alignment_loss(f_s, f_t)
    jax.block_until_ready(loss)
    ref = _reference(f_s, f_t)
    assert jnp.allclose(loss, ref, rtol=1e-4, atol=1e-5), (loss, ref)

    # Non-aligned multi-step shape: exercises feature-lane padding, the
    # balanced batch tile (2 x 304) and the in-kernel ragged-tail mask.
    B2, D2 = 600, 200
    g_s = jax.random.normal(k3, (B2, D2), dtype=jnp.float32)
    g_t = jax.random.normal(k4, (B2, D2), dtype=jnp.float32) * 1.5 + 0.3
    loss2 = correlation_alignment_loss(g_s, g_t)
    jax.block_until_ready(loss2)
    ref2 = _reference(g_s, g_t)
    assert jnp.allclose(loss2, ref2, rtol=2e-3, atol=1e-5), (loss2, ref2)

    # bf16 inputs: exercises 16-row sublane alignment and the bf16 MXU path.
    B3, D3 = 48, 160
    h_s = jax.random.normal(k5, (B3, D3), dtype=jnp.float32).astype(jnp.bfloat16)
    h_t = (jax.random.normal(k6, (B3, D3), dtype=jnp.float32) * 1.5
           + 0.3).astype(jnp.bfloat16)
    loss3 = correlation_alignment_loss(h_s, h_t)
    jax.block_until_ready(loss3)
    ref3 = _reference(h_s, h_t)
    assert jnp.allclose(loss3, ref3, rtol=1e-2, atol=1e-3), (loss3, ref3)

    print("KERNEL_OK")
</pallas_src>

<mosaic_0001>
module attributes {stable_mosaic.version = 11 : i64} {
  func.func @_coral_kernel(%arg0: i32, %arg1: memref<8x128xf32, #tpu.memory_space<vmem>>, %arg2: memref<8x128xf32, #tpu.memory_space<vmem>>, %arg3: memref<1x1xf32, #tpu.memory_space<smem>>, %arg4: memref<8x128xf32, #tpu.memory_space<vmem>>, %arg5: memref<128x8xf32, #tpu.memory_space<vmem>>, %arg6: memref<128x128xf32, #tpu.memory_space<vmem>>) attributes {dimension_semantics = [#tpu.dimension_semantics<arbitrary>], iteration_bounds = array<i64: 1>, scalar_prefetch = 0 : i64, scratch_operands = 3 : i64, tpu.core_type = #tpu.core_type<tc>, window_params = [{transform_indices = @transform_0, window_bounds = array<i64: 8, 128>}, {transform_indices = @transform_1, window_bounds = array<i64: 8, 128>}, {transform_indices = @transform_2, window_bounds = array<i64: 1, 1>}]} {
    %c0_i32 = arith.constant 0 : i32
    %0 = arith.cmpi eq, %arg0, %c0_i32 : i32
    %1 = arith.extui %0 : i1 to i32
    %c0_i32_0 = arith.constant 0 : i32
    %2 = arith.cmpi ne, %1, %c0_i32_0 : i32
    scf.if %2 {
      %cst_20 = arith.constant 0.000000e+00 : f32
      %26 = vector.broadcast %cst_20 : f32 to vector<8x128xf32>
      %c0_21 = arith.constant 0 : index
      %c0_22 = arith.constant 0 : index
      %27 = vector.load %arg4[%c0_21, %c0_22] : memref<8x128xf32, #tpu.memory_space<vmem>>, vector<8x128xf32>
      tpu.vector_store %arg4[%c0_21, %c0_22], %26 {strides = array<i32>} : memref<8x128xf32, #tpu.memory_space<vmem>>, vector<8x128xf32>,
      %cst_23 = arith.constant 0.000000e+00 : f32
      %28 = vector.broadcast %cst_23 : f32 to vector<128x128xf32>
      %c0_24 = arith.constant 0 : index
      %c0_25 = arith.constant 0 : index
      %29 = vector.load %arg6[%c0_24, %c0_25] : memref<128x128xf32, #tpu.memory_space<vmem>>, vector<128x128xf32>
      tpu.vector_store %arg6[%c0_24, %c0_25], %28 {strides = array<i32>} : memref<128x128xf32, #tpu.memory_space<vmem>>, vector<128x128xf32>,
    } else {
    }
    %c0 = arith.constant 0 : index
    %c0_1 = arith.constant 0 : index
    %3 = vector.load %arg1[%c0, %c0_1] : memref<8x128xf32, #tpu.memory_space<vmem>>, vector<8x128xf32>
    %c0_2 = arith.constant 0 : index
    %c0_3 = arith.constant 0 : index
    %4 = vector.load %arg2[%c0_2, %c0_3] : memref<8x128xf32, #tpu.memory_space<vmem>>, vector<8x128xf32>
    %c0_4 = arith.constant 0 : index
    %c0_5 = arith.constant 0 : index
    %5 = vector.load %arg4[%c0_4, %c0_5] : memref<8x128xf32, #tpu.memory_space<vmem>>, vector<1x128xf32>
    %cst = arith.constant dense<0.000000e+00> : vector<128xf32>
    %6 = vector.multi_reduction <add>, %3, %cst [0] : vector<8x128xf32> to vector<128xf32>
    %7 = vector.shape_cast %6 : vector<128xf32> to vector<1x128xf32>
    %8 = arith.addf %5, %7 : vector<1x128xf32>
    %c0_6 = arith.constant 0 : index
    %c0_7 = arith.constant 0 : index
    %9 = vector.load %arg4[%c0_6, %c0_7] : memref<8x128xf32, #tpu.memory_space<vmem>>, vector<1x128xf32>
    tpu.vector_store %arg4[%c0_6, %c0_7], %8 {strides = array<i32>} : memref<8x128xf32, #tpu.memory_space<vmem>>, vector<1x128xf32>,
    %c1 = arith.constant 1 : index
    %c0_8 = arith.constant 0 : index
    %10 = vector.load %arg4[%c1, %c0_8] : memref<8x128xf32, #tpu.memory_space<vmem>>, vector<1x128xf32>
    %cst_9 = arith.constant dense<0.000000e+00> : vector<128xf32>
    %11 = vector.multi_reduction <add>, %4, %cst_9 [0] : vector<8x128xf32> to vector<128xf32>
    %12 = vector.shape_cast %11 : vector<128xf32> to vector<1x128xf32>
    %13 = arith.addf %10, %12 : vector<1x128xf32>
    %c1_10 = arith.constant 1 : index
    %c0_11 = arith.constant 0 : index
    %14 = vector.load %arg4[%c1_10, %c0_11] : memref<8x128xf32, #tpu.memory_space<vmem>>, vector<1x128xf32>
    tpu.vector_store %arg4[%c1_10, %c0_11], %13 {strides = array<i32>} : memref<8x128xf32, #tpu.memory_space<vmem>>, vector<1x128xf32>,
    %15 = tpu.concatenate %3, %4 in 0 : vector<8x128xf32>, vector<8x128xf32> -> vector<16x128xf32>
    %cst_12 = arith.constant 0.000000e+00 : f32
    %16 = vector.broadcast %cst_12 : f32 to vector<8x128xf32>
    %17 = arith.subf %16, %4 : vector<8x128xf32>
    %18 = tpu.concatenate %3, %17 in 0 : vector<8x128xf32>, vector<8x128xf32> -> vector<16x128xf32>
    %c0_13 = arith.constant 0 : index
    %c0_14 = arith.constant 0 : index
    %19 = vector.load %arg6[%c0_13, %c0_14] : memref<128x128xf32, #tpu.memory_space<vmem>>, vector<128x128xf32>
    %cst_15 = arith.constant dense<0.000000e+00> : vector<128x128xf32>
    %20 = tpu.matmul %18, %15, %cst_15 {dimension_numbers = #tpu.dot_dimension_numbers<[0], [0], [1], [1], [0, 1, 1, 1], [], []>} : vector<16x128xf32>, vector<16x128xf32>, vector<128x128xf32> -> vector<128x128xf32>
    %21 = arith.addf %19, %20 : vector<128x128xf32>
    %c0_16 = arith.constant 0 : index
    %c0_17 = arith.constant 0 : index
    %22 = vector.load %arg6[%c0_16, %c0_17] : memref<128x128xf32, #tpu.memory_space<vmem>>, vector<128x128xf32>
    tpu.vector_store %arg6[%c0_16, %c0_17], %21 {strides = array<i32>} : memref<128x128xf32, #tpu.memory_space<vmem>>, vector<128x128xf32>,
    %c0_i32_18 = arith.constant 0 : i32
    %23 = arith.cmpi eq, %arg0, %c0_i32_18 : i32
    %24 = arith.extui %23 : i1 to i32
    %c0_i32_19 = arith.constant 0 : i32
    %25 = arith.cmpi ne, %24, %c0_i32_19 : i32
    scf.if %25 {
      %c0_20 = arith.constant 0 : index
      %c0_21 = arith.constant 0 : index
      %26 = vector.load %arg4[%c0_20, %c0_21] : memref<8x128xf32, #tpu.memory_space<vmem>>, vector<1x128xf32>
      %cst_22 = arith.constant 1.250000e-01 : f32
      %27 = vector.broadcast %cst_22 : f32 to vector<1x128xf32>
      %28 = arith.mulf %26, %27 : vector<1x128xf32>
      %c1_23 = arith.constant 1 : index
      %c0_24 = arith.constant 0 : index
      %29 = vector.load %arg4[%c1_23, %c0_24] : memref<8x128xf32, #tpu.memory_space<vmem>>, vector<1x128xf32>
      %cst_25 = arith.constant 1.250000e-01 : f32
      %30 = vector.broadcast %cst_25 : f32 to vector<1x128xf32>
      %31 = arith.mulf %29, %30 : vector<1x128xf32>
      %32 = arith.subf %28, %31 : vector<1x128xf32>
      %33 = arith.mulf %32, %32 : vector<1x128xf32>
      %34 = vector.shape_cast %33 : vector<1x128xf32> to vector<1x1x128xf32>
      %cst_26 = arith.constant dense<0.000000e+00> : vector<1xf32>
      %35 = vector.multi_reduction <add>, %34, %cst_26 [1, 2] : vector<1x1x128xf32> to vector<1xf32>
      %36 = vector.shape_cast %35 : vector<1xf32> to vector<1x1x1xf32>
      %37 = vector.extract %36[0, 0, 0] : f32 from vector<1x1x1xf32>
      %cst_27 = arith.constant 3.125000e-02 : f32
      %38 = arith.mulf %37, %cst_27 : f32
      %39 = tpu.iota {dimensions = array<i32: 0>} : vector<8x8xi32>
      %40 = tpu.iota {dimensions = array<i32: 1>} : vector<8x8xi32>
      %41 = arith.cmpi eq, %39, %40 : vector<8x8xi32>
      %42 = arith.extui %41 : vector<8x8xi1> to vector<8x8xi32>
      %43 = arith.sitofp %42 : vector<8x8xi32> to vector<8x8xf32>
      %c0_28 = arith.constant 0 : index
      %c0_29 = arith.constant 0 : index
      %44 = vector.load %arg4[%c0_28, %c0_29] : memref<8x128xf32, #tpu.memory_space<vmem>>, vector<8x128xf32>
      %cst_30 = arith.constant dense<0.000000e+00> : vector<128x8xf32>
      %45 = tpu.matmul %44, %43, %cst_30 {dimension_numbers = #tpu.dot_dimension_numbers<[0], [0], [1], [1], [0, 1, 1, 1], [], []>} : vector<8x128xf32>, vector<8x8xf32>, vector<128x8xf32> -> vector<128x8xf32>
      %cst_31 = arith.constant 1.250000e-01 : f32
      %46 = vector.broadcast %cst_31 : f32 to vector<128x8xf32>
      %47 = arith.mulf %45, %46 : vector<128x8xf32>
      %c0_32 = arith.constant 0 : index
      %c0_33 = arith.constant 0 : index
      %48 = vector.load %arg5[%c0_32, %c0_33] : memref<128x8xf32, #tpu.memory_space<vmem>>, vector<128x8xf32>
      tpu.vector_store %arg5[%c0_32, %c0_33], %47 {strides = array<i32>} : memref<128x8xf32, #tpu.memory_space<vmem>>, vector<128x8xf32>,
      %cst_34 = arith.constant 0.000000e+00 : f32
      %49 = vector.broadcast %cst_34 : f32 to vector<1x1xf32>
      %cst_35 = arith.constant 8.000000e+00 : f32
      %c0_i32_36 = arith.constant 0 : i32
      %c128_i32 = arith.constant 128 : i32
      %50 = arith.muli %c0_i32_36, %c128_i32 : i32
      %51 = tpu.assume_multiple %50, 128 : i32
      %52 = arith.index_cast %51 : i32 to index
      %c0_37 = arith.constant 0 : index
      %53 = vector.load %arg6[%52, %c0_37] : memref<128x128xf32, #tpu.memory_space<vmem>>, vector<128x128xf32>
      %54 = arith.index_cast %51 : i32 to index
      %c0_38 = arith.constant 0 : index
      %55 = vector.load %arg5[%54, %c0_38] : memref<128x8xf32, #tpu.memory_space<vmem>>, vector<128x1xf32>
      %56 = arith.index_cast %51 : i32 to index
      %c1_39 = arith.constant 1 : index
      %57 = vector.load %arg5[%56, %c1_39] : memref<128x8xf32, #tpu.memory_space<vmem>>, vector<128x1xf32>
      %58 = vector.broadcast %55 : vector<128x1xf32> to vector<128x128xf32>
      %59 = vector.broadcast %28 : vector<1x128xf32> to vector<128x128xf32>
      %60 = arith.mulf %58, %59 : vector<128x128xf32>
      %61 = vector.broadcast %57 : vector<128x1xf32> to vector<128x128xf32>
      %62 = vector.broadcast %31 : vector<1x128xf32> to vector<128x128xf32>
      %63 = arith.mulf %61, %62 : vector<128x128xf32>
      %64 = arith.subf %60, %63 : vector<128x128xf32>
      %65 = vector.broadcast %cst_35 : f32 to vector<128x128xf32>
      %66 = arith.mulf %65, %64 : vector<128x128xf32>
      %67 = arith.subf %53, %66 : vector<128x128xf32>
      %68 = arith.mulf %67, %67 : vector<128x128xf32>
      %69 = vector.shape_cast %68 : vector<128x128xf32> to vector<1x128x128xf32>
      %cst_40 = arith.constant dense<0.000000e+00> : vector<1xf32>
      %70 = vector.multi_reduction <add>, %69, %cst_40 [1, 2] : vector<1x128x128xf32> to vector<1xf32>
      %71 = vector.shape_cast %70 : vector<1xf32> to vector<1x1x1xf32>
      %72 = vector.extract %71[0, 0, 0] : f32 from vector<1x1x1xf32>
      %73 = vector.broadcast %72 : f32 to vector<1x1xf32>
      %74 = arith.addf %49, %73 : vector<1x1xf32>
      %c1_i32 = arith.constant 1 : i32
      %75 = vector.extract %74[0, 0] : f32 from vector<1x1xf32>
      %cst_41 = arith.constant 1.99298465E-5 : f32
      %76 = arith.mulf %75, %cst_41 : f32
      %77 = arith.addf %38, %76 : f32
      %c0_42 = arith.constant 0 : index
      %c0_43 = arith.constant 0 : index
      %78 = memref.load %arg3[%c0_42, %c0_43] : memref<1x1xf32, #tpu.memory_space<smem>>
      memref.store %77, %arg3[%c0_42, %c0_43] : memref<1x1xf32, #tpu.memory_space<smem>>
    } else {
    }
    return
  }
  func.func @transform_0(%arg0: i32) -> (i32, i32) {
    %c0_i32 = arith.constant 0 : i32
    %c0_i32_0 = arith.constant 0 : i32
    return %arg0, %c0_i32 : i32, i32
  }
  func.func @transform_1(%arg0: i32) -> (i32, i32) {
    %c0_i32 = arith.constant 0 : i32
    %c0_i32_0 = arith.constant 0 : i32
    return %arg0, %c0_i32 : i32, i32
  }
  func.func @transform_2(%arg0: i32) -> (i32, i32) {
    %c0_i32 = arith.constant 0 : i32
    %c0_i32_0 = arith.constant 0 : i32
    %c0_i32_1 = arith.constant 0 : i32
    return %c0_i32, %c0_i32_0 : i32, i32
  }
}

</mosaic_0001>

<llo_original>
// kernel: tpu_custom_call.1
$region0: #{tpu_custom_call.1}
  #allocation0 [shape = 'u32[]', space=smem, size = 0x4, offset = 0x4, fixed_abs, tag = 'smem constant byte address 0x4 - core index']
  #allocation1 [shape = 'u32[144,128]{1,0:T(1,128)}', space=vmem, size = 0x12000, scoped, tag = 'internal scratch']
  #allocation2 [shape = 'f32[8,128]{1,0:T(8,128)}', space=vmem, size = 0x1000, scoped, tag = 'scratch operand']
  #allocation3 [shape = 'f32[128,8]{1,0:T(8,128)}', space=vmem, size = 0x10000, scoped, tag = 'scratch operand']
  #allocation4 [shape = 'f32[128,128]{1,0:T(8,128)}', space=vmem, size = 0x10000, scoped, tag = 'scratch operand']
  %s0 = inlined_call_operand.hbm [shape: f32[8,128], index: 0, kind: input, shape index: {}]
  %s1 = inlined_call_operand.hbm [shape: f32[8,128], index: 1, kind: input, shape index: {}]
  %s2 = inlined_call_operand.hbm [shape: f32[1,1], index: 2, kind: output, shape index: {}]
  %s3 = sld [smem:[#allocation0]]
  $region34: #{tpu_custom_call.1} parent=0
    _
  %s5 = ssub.s32 1, %s3
  %s6 = scalar_select 0, %s5, %s3
  $region1: #{tpu_custom_call.1} parent=0
    #allocation5 [shape = 'u8[4096]{0}', space=vmem, size = 0x1000, scoped, tag = 'input window, operand 0, single buffered']
    #allocation6 [shape = 's32[1]{0}', space=sflag, size = 0x4, scoped, tag = 'scoped memory for tpu_custom_call.1']
    #allocation7 [shape = 's32[1]{0}', space=sflag, size = 0x4, scoped, tag = 'scoped memory for tpu_custom_call.1']
    #allocation8 [shape = 'u8[4096]{0}', space=vmem, size = 0x1000, scoped, tag = 'input window, operand 1, single buffered']
    #allocation9 [shape = 's32[1]{0}', space=sflag, size = 0x4, scoped, tag = 'scoped memory for tpu_custom_call.1']
    #allocation10 [shape = 'u8[512]{0}', space=smem, size = 0x200, scoped, tag = 'output window, operand 0, single buffered']
    %7 = vsyncpa [#allocation6], 0
    %8 = vsyncpa [#allocation9], 0
    %9 = vsyncpa [#allocation7], 0
    // Predicated region
    $region2: #{tpu_custom_call.1} parent=1 // pred_check
      _
    $region3: #{tpu_custom_call.1} parent=1 // pred_check_branch
      %11 = sbr.rel (0) target = $region5
    $region4: #{tpu_custom_call.1} parent=1 // pred_region
      %s13 = ssub.s32 128, 128
      %14 = vsyncadd [#allocation6], %s13
      %s16 = sshll.u32 [#allocation5], 4
      %s17 = int_to_ptr.vmem [resolvable:$true] %s16
      %19 = dma.hbm_to_vmem [thread:$0]  %s0, 128, %s17, [#allocation6]
    $region5: #{tpu_custom_call.1} parent=1 // pred_fallthru
      _
    // Predicated region
    $region6: #{tpu_custom_call.1} parent=1 // pred_check
      _
    $region7: #{tpu_custom_call.1} parent=1 // pred_check_branch
      %21 = sbr.rel (0) target = $region9
    $region8: #{tpu_custom_call.1} parent=1 // pred_region
      %s23 = ssub.s32 128, 128
      %24 = vsyncadd [#allocation9], %s23
      %s26 = sshll.u32 [#allocation8], 4
      %s27 = int_to_ptr.vmem [resolvable:$true] %s26
      %29 = dma.hbm_to_vmem [thread:$0]  %s1, 128, %s27, [#allocation9]
    $region9: #{tpu_custom_call.1} parent=1 // pred_fallthru
      _
    // Predicated region
    $region10: #{tpu_custom_call.1} parent=1 // pred_check
      _
    $region11: #{tpu_custom_call.1} parent=1 // pred_check_branch
      %31 = sbr.rel (0) target = $region13
    $region12: #{tpu_custom_call.1} parent=1 // pred_region
      %32 = dma.done [#allocation6], 128
    $region13: #{tpu_custom_call.1} parent=1 // pred_fallthru
      _
    // Predicated region
    $region14: #{tpu_custom_call.1} parent=1 // pred_check
      _
    $region15: #{tpu_custom_call.1} parent=1 // pred_check_branch
      %34 = sbr.rel (0) target = $region17
    $region16: #{tpu_custom_call.1} parent=1 // pred_region
      %35 = dma.done [#allocation9], 128
    $region17: #{tpu_custom_call.1} parent=1 // pred_fallthru
      _
    %p36 = scmp.eq.s32.totalorder 0, 0
    // Predicated region
    $region18: #{tpu_custom_call.1} parent=1 // pred_check
      %p37 = pneg %p36
    $region19: #{tpu_custom_call.1} parent=1 // pred_check_branch
      %39 = sbr.rel (%p37) target = $region21
    $region20: #{tpu_custom_call.1} parent=1 // pred_region
      %40 = vst [vmem:[#allocation2] sm:$0xff] 0.0
      %41 = vst [vmem:[#allocation4] sm:$0xff] 0.0
      %42 = vst [vmem:[#allocation4 + $0x8] sm:$0xff] 0.0
      %43 = vst [vmem:[#allocation4 + $0x10] sm:$0xff] 0.0
      %44 = vst [vmem:[#allocation4 + $0x18] sm:$0xff] 0.0
      %45 = vst [vmem:[#allocation4 + $0x20] sm:$0xff] 0.0
      %46 = vst [vmem:[#allocation4 + $0x28] sm:$0xff] 0.0
      %47 = vst [vmem:[#allocation4 + $0x30] sm:$0xff] 0.0
      %48 = vst [vmem:[#allocation4 + $0x38] sm:$0xff] 0.0
      %49 = vst [vmem:[#allocation4 + $0x40] sm:$0xff] 0.0
      %50 = vst [vmem:[#allocation4 + $0x48] sm:$0xff] 0.0
      %51 = vst [vmem:[#allocation4 + $0x50] sm:$0xff] 0.0
      %52 = vst [vmem:[#allocation4 + $0x58] sm:$0xff] 0.0
      %53 = vst [vmem:[#allocation4 + $0x60] sm:$0xff] 0.0
      %54 = vst [vmem:[#allocation4 + $0x68] sm:$0xff] 0.0
      %55 = vst [vmem:[#allocation4 + $0x70] sm:$0xff] 0.0
      %56 = vst [vmem:[#allocation4 + $0x78] sm:$0xff] 0.0
    $region21: #{tpu_custom_call.1} parent=1 // pred_fallthru
      _
    %v57 = vld [vmem:[#allocation5] sm:$0xff]
    %v58 = vld [vmem:[#allocation8] sm:$0xff]
    %v59 = vld [vmem:[#allocation2] sm:$0x1]
    %v60 = vrot.slane %v57, 4
    %v61 = vadd.f32 %v57, %v60
    %v62 = vrot.slane %v61, 2
    %v63 = vadd.f32 %v61, %v62
    %v64 = vrot.slane %v63, 1
    %v65 = vadd.f32 %v63, %v64
    %v66 = vadd.f32 %v59, %v65
    %67 = vst [vmem:[#allocation2] sm:$0x1] %v66
    %v68 = vld [vmem:[#allocation2 + $0x1] sm:$0x1]
    %v69 = vrot.slane %v58, 4
    %v70 = vadd.f32 %v58, %v69
    %v71 = vrot.slane %v70, 2
    %v72 = vadd.f32 %v70, %v71
    %v73 = vrot.slane %v72, 1
    %v74 = vadd.f32 %v72, %v73
    %v75 = vadd.f32 %v68, %v74
    %76 = vst [vmem:[#allocation2 + $0x1] sm:$0x1] %v75
    %v77 = vsub.f32 0.0, %v58
    %v78 = vld [vmem:[#allocation4] sm:$0xff]
    %v79 = vld [vmem:[#allocation4 + $0x8] sm:$0xff]
    %v80 = vld [vmem:[#allocation4 + $0x10] sm:$0xff]
    %v81 = vld [vmem:[#allocation4 + $0x18] sm:$0xff]
    %v82 = vld [vmem:[#allocation4 + $0x20] sm:$0xff]
    %v83 = vld [vmem:[#allocation4 + $0x28] sm:$0xff]
    %v84 = vld [vmem:[#allocation4 + $0x30] sm:$0xff]
    %v85 = vld [vmem:[#allocation4 + $0x38] sm:$0xff]
    %v86 = vld [vmem:[#allocation4 + $0x40] sm:$0xff]
    %v87 = vld [vmem:[#allocation4 + $0x48] sm:$0xff]
    %v88 = vld [vmem:[#allocation4 + $0x50] sm:$0xff]
    %v89 = vld [vmem:[#allocation4 + $0x58] sm:$0xff]
    %v90 = vld [vmem:[#allocation4 + $0x60] sm:$0xff]
    %v91 = vld [vmem:[#allocation4 + $0x68] sm:$0xff]
    %v92 = vld [vmem:[#allocation4 + $0x70] sm:$0xff]
    %v93 = vld [vmem:[#allocation4 + $0x78] sm:$0xff]
    %94 = vxpose.xlu0.b32.start [1/16] %v57, 128
    %95 = vxpose.xlu0.b32.cont [2/16] %v77, 128
    %96 = vxpose.xlu0.b32.cont [3/16] 0.0, 128
    %97 = vxpose.xlu0.b32.cont [4/16] 0.0, 128
    %98 = vxpose.xlu0.b32.cont [5/16] 0.0, 128
    %99 = vxpose.xlu0.b32.cont [6/16] 0.0, 128
    %100 = vxpose.xlu0.b32.cont [7/16] 0.0, 128
    %101 = vxpose.xlu0.b32.cont [8/16] 0.0, 128
    %102 = vxpose.xlu0.b32.cont [9/16] 0.0, 128
    %103 = vxpose.xlu0.b32.cont [10/16] 0.0, 128
    %104 = vxpose.xlu0.b32.cont [11/16] 0.0, 128
    %105 = vxpose.xlu0.b32.cont [12/16] 0.0, 128
    %106 = vxpose.xlu0.b32.cont [13/16] 0.0, 128
    %107 = vxpose.xlu0.b32.cont [14/16] 0.0, 128
    %108 = vxpose.xlu0.b32.cont [15/16] 0.0, 128
    %109 = vxpose.xlu0.b32.end [16/16] 0.0, 128
    %v110 = vpop.trf.xlu0
    %v111 = vpop.trf.xlu0
    %v112 = vpop.trf.xlu0
    %v113 = vpop.trf.xlu0
    %v114 = vpop.trf.xlu0
    %v115 = vpop.trf.xlu0
    %v116 = vpop.trf.xlu0
    %v117 = vpop.trf.xlu0
    %v118 = vpop.trf.xlu0
    %v119 = vpop.trf.xlu0
    %v120 = vpop.trf.xlu0
    %v121 = vpop.trf.xlu0
    %v122 = vpop.trf.xlu0
    %v123 = vpop.trf.xlu0
    %v124 = vpop.trf.xlu0
    %v125 = vpop.trf.xlu0
    %vm126 = vcmask 130048
    %v128 = vsel %vm126, %v110, 0
    %v131 = vsel %vm126, %v111, 0
    %v134 = vsel %vm126, %v112, 0
    %v137 = vsel %vm126, %v113, 0
    %v140 = vsel %vm126, %v114, 0
    %v143 = vsel %vm126, %v115, 0
    %v146 = vsel %vm126, %v116, 0
    %v149 = vsel %vm126, %v117, 0
    %v152 = vsel %vm126, %v118, 0
    %v155 = vsel %vm126, %v119, 0
    %v158 = vsel %vm126, %v120, 0
    %v161 = vsel %vm126, %v121, 0
    %v164 = vsel %vm126, %v122, 0
    %v167 = vsel %vm126, %v123, 0
    %v170 = vsel %vm126, %v124, 0
    %v173 = vsel %vm126, %v125, 0
    %175 = vmatprep.subr.mxu0 0.0
    %176 = vmatpush1.msra.mxu0 %v57
    %177 = vmatprep.subr.mxu0 0.0
    %178 = vmatpush1.msra.mxu0 %v58
    %179 = vmatprep.subr.mxu0 0.0
    %180 = vmatpush1.msra.mxu0 0.0
    %181 = vmatprep.subr.mxu0 0.0
    %182 = vmatpush1.msra.mxu0 0.0
    %183 = vmatprep.subr.mxu0 0.0
    %184 = vmatpush1.msra.mxu0 0.0
    %185 = vmatprep.subr.mxu0 0.0
    %186 = vmatpush1.msra.mxu0 0.0
    %187 = vmatprep.subr.mxu0 0.0
    %188 = vmatpush1.msra.mxu0 0.0
    %189 = vmatprep.subr.mxu0 0.0
    %190 = vmatpush1.msra.mxu0 0.0
    %191 = vmatprep.subr.mxu0 0.0
    %192 = vmatpush1.msra.mxu0 0.0
    %193 = vmatprep.subr.mxu0 0.0
    %194 = vmatpush1.msra.mxu0 0.0
    %195 = vmatprep.subr.mxu0 0.0
    %196 = vmatpush1.msra.mxu0 0.0
    %197 = vmatprep.subr.mxu0 0.0
    %198 = vmatpush1.msra.mxu0 0.0
    %199 = vmatprep.subr.mxu0 0.0
    %200 = vmatpush1.msra.mxu0 0.0
    %201 = vmatprep.subr.mxu0 0.0
    %202 = vmatpush1.msra.mxu0 0.0
    %203 = vmatprep.subr.mxu0 0.0
    %204 = vmatpush1.msra.mxu0 0.0
    %205 = vmatprep.subr.mxu0 0.0
    %206 = vmatpush1.msra.mxu0 0.0
    %207 = vmatprep.subr.mxu0 0.0
    %208 = vmatpush1.msra.mxu0 0.0
    %209 = vmatprep.subr.mxu0 0.0
    %210 = vmatpush1.msra.mxu0 0.0
    %211 = vmatprep.subr.mxu0 0.0
    %212 = vmatpush1.msra.mxu0 0.0
    %213 = vmatprep.subr.mxu0 0.0
    %214 = vmatpush1.msra.mxu0 0.0
    %215 = vmatprep.subr.mxu0 0.0
    %216 = vmatpush1.msra.mxu0 0.0
    %217 = vmatprep.subr.mxu0 0.0
    %218 = vmatpush1.msra.mxu0 0.0
    %219 = vmatprep.subr.mxu0 0.0
    %220 = vmatpush1.msra.mxu0 0.0
    %221 = vmatprep.subr.mxu0 0.0
    %222 = vmatpush1.msra.mxu0 0.0
    %223 = vmatprep.subr.mxu0 0.0
    %224 = vmatpush1.msra.mxu0 0.0
    %225 = vmatprep.subr.mxu0 0.0
    %226 = vmatpush1.msra.mxu0 0.0
    %227 = vmatprep.subr.mxu0 0.0
    %228 = vmatpush1.msra.mxu0 0.0
    %229 = vmatprep.subr.mxu0 0.0
    %230 = vmatpush1.msra.mxu0 0.0
    %231 = vmatprep.subr.mxu0 0.0
    %232 = vmatpush1.msra.mxu0 0.0
    %233 = vmatprep.subr.mxu0 0.0
    %234 = vmatpush1.msra.mxu0 0.0
    %235 = vmatprep.subr.mxu0 0.0
    %236 = vmatpush1.msra.mxu0 0.0
    %237 = vmatprep.subr.mxu0 0.0
    %238 = vmatpush1.msra.mxu0 0.0
    %239 = vmatprep.mubr.f32.mxu0 0.0
    %240 = vmatmul.mubr.f32.gmra.mrb[0].mxu0 %v128
    %v241 = vpop.f32.mrb[0].mxu0
    %v242 = vadd.f32 0.0, %v241
    %v243 = vpop.f32.mrb[0].mxu0
    %244 = vmatprep.mubr.f32.mxu0 0.0
    %245 = vmatmul.mubr.f32.gmra.mrb[0].mxu0 %v131
    %v246 = vpop.f32.mrb[0].mxu0
    %v247 = vadd.f32 0.0, %v246
    %v248 = vpop.f32.mrb[0].mxu0
    %249 = vmatprep.mubr.f32.mxu0 0.0
    %250 = vmatmul.mubr.f32.gmra.mrb[0].mxu0 %v134
    %v251 = vpop.f32.mrb[0].mxu0
    %v252 = vadd.f32 0.0, %v251
    %v253 = vpop.f32.mrb[0].mxu0
    %254 = vmatprep.mubr.f32.mxu0 0.0
    %255 = vmatmul.mubr.f32.gmra.mrb[0].mxu0 %v137
    %v256 = vpop.f32.mrb[0].mxu0
    %v257 = vadd.f32 0.0, %v256
    %v258 = vpop.f32.mrb[0].mxu0
    %259 = vmatprep.mubr.f32.mxu0 0.0
    %260 = vmatmul.mubr.f32.gmra.mrb[0].mxu0 %v140
    %v261 = vpop.f32.mrb[0].mxu0
    %v262 = vadd.f32 0.0, %v261
    %v263 = vpop.f32.mrb[0].mxu0
    %264 = vmatprep.mubr.f32.mxu0 0.0
    %265 = vmatmul.mubr.f32.gmra.mrb[0].mxu0 %v143
    %v266 = vpop.f32.mrb[0].mxu0
    %v267 = vadd.f32 0.0, %v266
    %v268 = vpop.f32.mrb[0].mxu0
    %269 = vmatprep.mubr.f32.mxu0 0.0
    %270 = vmatmul.mubr.f32.gmra.mrb[0].mxu0 %v146
    %v271 = vpop.f32.mrb[0].mxu0
    %v272 = vadd.f32 0.0, %v271
    %v273 = vpop.f32.mrb[0].mxu0
    %274 = vmatprep.mubr.f32.mxu0 0.0
    %275 = vmatmul.mubr.f32.gmra.mrb[0].mxu0 %v149
    %v276 = vpop.f32.mrb[0].mxu0
    %v277 = vadd.f32 0.0, %v276
    %v278 = vpop.f32.mrb[0].mxu0
    %279 = vmatprep.mubr.f32.mxu0 0.0
    %280 = vmatmul.mubr.f32.gmra.mrb[0].mxu0 %v152
    %v281 = vpop.f32.mrb[0].mxu0
    %v282 = vadd.f32 0.0, %v281
    %v283 = vpop.f32.mrb[0].mxu0
    %284 = vmatprep.mubr.f32.mxu0 0.0
    %285 = vmatmul.mubr.f32.gmra.mrb[0].mxu0 %v155
    %v286 = vpop.f32.mrb[0].mxu0
    %v287 = vadd.f32 0.0, %v286
    %v288 = vpop.f32.mrb[0].mxu0
    %289 = vmatprep.mubr.f32.mxu0 0.0
    %290 = vmatmul.mubr.f32.gmra.mrb[0].mxu0 %v158
    %v291 = vpop.f32.mrb[0].mxu0
    %v292 = vadd.f32 0.0, %v291
    %v293 = vpop.f32.mrb[0].mxu0
    %294 = vmatprep.mubr.f32.mxu0 0.0
    %295 = vmatmul.mubr.f32.gmra.mrb[0].mxu0 %v161
    %v296 = vpop.f32.mrb[0].mxu0
    %v297 = vadd.f32 0.0, %v296
    %v298 = vpop.f32.mrb[0].mxu0
    %299 = vmatprep.mubr.f32.mxu0 0.0
    %300 = vmatmul.mubr.f32.gmra.mrb[0].mxu0 %v164
    %v301 = vpop.f32.mrb[0].mxu0
    %v302 = vadd.f32 0.0, %v301
    %v303 = vpop.f32.mrb[0].mxu0
    %304 = vmatprep.mubr.f32.mxu0 0.0
    %305 = vmatmul.mubr.f32.gmra.mrb[0].mxu0 %v167
    %v306 = vpop.f32.mrb[0].mxu0
    %v307 = vadd.f32 0.0, %v306
    %v308 = vpop.f32.mrb[0].mxu0
    %309 = vmatprep.mubr.f32.mxu0 0.0
    %310 = vmatmul.mubr.f32.gmra.mrb[0].mxu0 %v170
    %v311 = vpop.f32.mrb[0].mxu0
    %v312 = vadd.f32 0.0, %v311
    %v313 = vpop.f32.mrb[0].mxu0
    %314 = vmatprep.mubr.f32.mxu0 0.0
    %315 = vmatmul.mubr.f32.gmra.mrb[0].mxu0 %v173
    %v316 = vpop.f32.mrb[0].mxu0
    %v317 = vadd.f32 0.0, %v316
    %v318 = vpop.f32.mrb[0].mxu0
    %319 = vdwg.mxu0
    %v320 = vadd.f32 %v78, %v242
    %v321 = vadd.f32 %v79, %v247
    %v322 = vadd.f32 %v80, %v252
    %v323 = vadd.f32 %v81, %v257
    %v324 = vadd.f32 %v82, %v262
    %v325 = vadd.f32 %v83, %v267
    %v326 = vadd.f32 %v84, %v272
    %v327 = vadd.f32 %v85, %v277
    %v328 = vadd.f32 %v86, %v282
    %v329 = vadd.f32 %v87, %v287
    %v330 = vadd.f32 %v88, %v292
    %v331 = vadd.f32 %v89, %v297
    %v332 = vadd.f32 %v90, %v302
    %v333 = vadd.f32 %v91, %v307
    %v334 = vadd.f32 %v92, %v312
    %v335 = vadd.f32 %v93, %v317
    %336 = vst [vmem:[#allocation4] sm:$0xff] %v320
    %337 = vst [vmem:[#allocation4 + $0x8] sm:$0xff] %v321
    %338 = vst [vmem:[#allocation4 + $0x10] sm:$0xff] %v322
    %339 = vst [vmem:[#allocation4 + $0x18] sm:$0xff] %v323
    %340 = vst [vmem:[#allocation4 + $0x20] sm:$0xff] %v324
    %341 = vst [vmem:[#allocation4 + $0x28] sm:$0xff] %v325
    %342 = vst [vmem:[#allocation4 + $0x30] sm:$0xff] %v326
    %343 = vst [vmem:[#allocation4 + $0x38] sm:$0xff] %v327
    %344 = vst [vmem:[#allocation4 + $0x40] sm:$0xff] %v328
    %345 = vst [vmem:[#allocation4 + $0x48] sm:$0xff] %v329
    %346 = vst [vmem:[#allocation4 + $0x50] sm:$0xff] %v330
    %347 = vst [vmem:[#allocation4 + $0x58] sm:$0xff] %v331
    %348 = vst [vmem:[#allocation4 + $0x60] sm:$0xff] %v332
    %349 = vst [vmem:[#allocation4 + $0x68] sm:$0xff] %v333
    %350 = vst [vmem:[#allocation4 + $0x70] sm:$0xff] %v334
    %351 = vst [vmem:[#allocation4 + $0x78] sm:$0xff] %v335
    // Predicated region
    $region22: #{tpu_custom_call.1} parent=1 // pred_check
      %p352 = pneg %p36
    $region23: #{tpu_custom_call.1} parent=1 // pred_check_branch
      %354 = sbr.rel (%p352) target = $region25
    $region24: #{tpu_custom_call.1} parent=1 // pred_region
      %v355 = vld [vmem:[#allocation2] sm:$0x1]
      %v356 = vmul.f32 %v355, 0.125
      %v357 = vld [vmem:[#allocation2 + $0x1] sm:$0x1]
      %v358 = vmul.f32 %v357, 0.125
      %v359 = vsub.f32 %v356, %v358
      %v360 = vmul.f32 %v359, %v359
      %vm361 = vcmask 1040384
      %v362 = vsel %vm361, %v360, 0.0
      %363 = vadd.xlane.f32.xlu0 %v362
      %v364 = vpop.xlane.xlu0 %363
      %v365 = vrot.slane %v364, 4
      %v366 = vadd.f32 %v364, %v365
      %v367 = vrot.slane %v366, 2
      %v368 = vadd.f32 %v366, %v367
      %v369 = vrot.slane %v368, 1
      %v370 = vadd.f32 %v368, %v369
      %s371 = vtos %v370
      %s372 = smul.f32 %s371, 0.03125
      %v373 = vlaneseq
      %v374 = vshrl.u32 %v373, 7
      %v375 = vlaneseq
      %v376 = vand.u32 %v375, 127
      %vm377 = vcmp.eq.s32.totalorder %v374, %v376
      %v378 = vsel %vm377, 1, 0
      %v379 = vcvt.s32.f32 %v378
      %v380 = vld [vmem:[#allocation2] sm:$0xff]
      %381 = vxpose.xlu0.b32.start [1/16] %v380, 128
      %382 = vxpose.xlu0.b32.cont [2/16] 0.0, 128
      %383 = vxpose.xlu0.b32.cont [3/16] 0.0, 128
      %384 = vxpose.xlu0.b32.cont [4/16] 0.0, 128
      %385 = vxpose.xlu0.b32.cont [5/16] 0.0, 128
      %386 = vxpose.xlu0.b32.cont [6/16] 0.0, 128
      %387 = vxpose.xlu0.b32.cont [7/16] 0.0, 128
      %388 = vxpose.xlu0.b32.cont [8/16] 0.0, 128
      %389 = vxpose.xlu0.b32.cont [9/16] 0.0, 128
      %390 = vxpose.xlu0.b32.cont [10/16] 0.0, 128
      %391 = vxpose.xlu0.b32.cont [11/16] 0.0, 128
      %392 = vxpose.xlu0.b32.cont [12/16] 0.0, 128
      %393 = vxpose.xlu0.b32.cont [13/16] 0.0, 128
      %394 = vxpose.xlu0.b32.cont [14/16] 0.0, 128
      %395 = vxpose.xlu0.b32.cont [15/16] 0.0, 128
      %396 = vxpose.xlu0.b32.end [16/16] 0.0, 128
      %v397 = vpop.trf.xlu0
      %v398 = vpop.trf.xlu0
      %v399 = vpop.trf.xlu0
      %v400 = vpop.trf.xlu0
      %v401 = vpop.trf.xlu0
      %v402 = vpop.trf.xlu0
      %v403 = vpop.trf.xlu0
      %v404 = vpop.trf.xlu0
      %v405 = vpop.trf.xlu0
      %v406 = vpop.trf.xlu0
      %v407 = vpop.trf.xlu0
      %v408 = vpop.trf.xlu0
      %v409 = vpop.trf.xlu0
      %v410 = vpop.trf.xlu0
      %v411 = vpop.trf.xlu0
      %v412 = vpop.trf.xlu0
      %vm413 = vcmask 64512
      %v415 = vsel %vm413, %v397, 0
      %v418 = vsel %vm413, %v398, 0
      %v421 = vsel %vm413, %v399, 0
      %v424 = vsel %vm413, %v400, 0
      %v427 = vsel %vm413, %v401, 0
      %v430 = vsel %vm413, %v402, 0
      %v433 = vsel %vm413, %v403, 0
      %v436 = vsel %vm413, %v404, 0
      %v439 = vsel %vm413, %v405, 0
      %v442 = vsel %vm413, %v406, 0
      %v445 = vsel %vm413, %v407, 0
      %v448 = vsel %vm413, %v408, 0
      %v451 = vsel %vm413, %v409, 0
      %v454 = vsel %vm413, %v410, 0
      %v457 = vsel %vm413, %v411, 0
      %v460 = vsel %vm413, %v412, 0
      %462 = vmatprep.subr.mxu0 0.0
      %463 = vmatpush1.msra.mxu0 %v379
      %464 = vmatprep.subr.mxu0 0.0
      %465 = vmatpush1.msra.mxu0 0.0
      %466 = vmatprep.subr.mxu0 0.0
      %467 = vmatpush1.msra.mxu0 0.0
      %468 = vmatprep.subr.mxu0 0.0
      %469 = vmatpush1.msra.mxu0 0.0
      %470 = vmatprep.subr.mxu0 0.0
      %471 = vmatpush1.msra.mxu0 0.0
      %472 = vmatprep.subr.mxu0 0.0
      %473 = vmatpush1.msra.mxu0 0.0
      %474 = vmatprep.subr.mxu0 0.0
      %475 = vmatpush1.msra.mxu0 0.0
      %476 = vmatprep.subr.mxu0 0.0
      %477 = vmatpush1.msra.mxu0 0.0
      %478 = vmatprep.subr.mxu0 0.0
      %479 = vmatpush1.msra.mxu0 0.0
      %480 = vmatprep.subr.mxu0 0.0
      %481 = vmatpush1.msra.mxu0 0.0
      %482 = vmatprep.subr.mxu0 0.0
      %483 = vmatpush1.msra.mxu0 0.0
      %484 = vmatprep.subr.mxu0 0.0
      %485 = vmatpush1.msra.mxu0 0.0
      %486 = vmatprep.subr.mxu0 0.0
      %487 = vmatpush1.msra.mxu0 0.0
      %488 = vmatprep.subr.mxu0 0.0
      %489 = vmatpush1.msra.mxu0 0.0
      %490 = vmatprep.subr.mxu0 0.0
      %491 = vmatpush1.msra.mxu0 0.0
      %492 = vmatprep.subr.mxu0 0.0
      %493 = vmatpush1.msra.mxu0 0.0
      %494 = vmatprep.subr.mxu0 0.0
      %495 = vmatpush1.msra.mxu0 0.0
      %496 = vmatprep.subr.mxu0 0.0
      %497 = vmatpush1.msra.mxu0 0.0
      %498 = vmatprep.subr.mxu0 0.0
      %499 = vmatpush1.msra.mxu0 0.0
      %500 = vmatprep.subr.mxu0 0.0
      %501 = vmatpush1.msra.mxu0 0.0
      %502 = vmatprep.subr.mxu0 0.0
      %503 = vmatpush1.msra.mxu0 0.0
      %504 = vmatprep.subr.mxu0 0.0
      %505 = vmatpush1.msra.mxu0 0.0
      %506 = vmatprep.subr.mxu0 0.0
      %507 = vmatpush1.msra.mxu0 0.0
      %508 = vmatprep.subr.mxu0 0.0
      %509 = vmatpush1.msra.mxu0 0.0
      %510 = vmatprep.subr.mxu0 0.0
      %511 = vmatpush1.msra.mxu0 0.0
      %512 = vmatprep.subr.mxu0 0.0
      %513 = vmatpush1.msra.mxu0 0.0
      %514 = vmatprep.subr.mxu0 0.0
      %515 = vmatpush1.msra.mxu0 0.0
      %516 = vmatprep.subr.mxu0 0.0
      %517 = vmatpush1.msra.mxu0 0.0
      %518 = vmatprep.subr.mxu0 0.0
      %519 = vmatpush1.msra.mxu0 0.0
      %520 = vmatprep.subr.mxu0 0.0
      %521 = vmatpush1.msra.mxu0 0.0
      %522 = vmatprep.subr.mxu0 0.0
      %523 = vmatpush1.msra.mxu0 0.0
      %524 = vmatprep.subr.mxu0 0.0
      %525 = vmatpush1.msra.mxu0 0.0
      %526 = vmatprep.mubr.f32.mxu0 0.0
      %527 = vmatmul.mubr.f32.gmra.mrb[0].mxu0 %v415
      %v528 = vpop.f32.mrb[0].mxu0
      %v529 = vadd.f32 0.0, %v528
      %v530 = vpop.f32.mrb[0].mxu0
      %531 = vmatprep.mubr.f32.mxu0 0.0
      %532 = vmatmul.mubr.f32.gmra.mrb[0].mxu0 %v418
      %v533 = vpop.f32.mrb[0].mxu0
      %v534 = vadd.f32 0.0, %v533
      %v535 = vpop.f32.mrb[0].mxu0
      %536 = vmatprep.mubr.f32.mxu0 0.0
      %537 = vmatmul.mubr.f32.gmra.mrb[0].mxu0 %v421
      %v538 = vpop.f32.mrb[0].mxu0
      %v539 = vadd.f32 0.0, %v538
      %v540 = vpop.f32.mrb[0].mxu0
      %541 = vmatprep.mubr.f32.mxu0 0.0
      %542 = vmatmul.mubr.f32.gmra.mrb[0].mxu0 %v424
      %v543 = vpop.f32.mrb[0].mxu0
      %v544 = vadd.f32 0.0, %v543
      %v545 = vpop.f32.mrb[0].mxu0
      %546 = vmatprep.mubr.f32.mxu0 0.0
      %547 = vmatmul.mubr.f32.gmra.mrb[0].mxu0 %v427
      %v548 = vpop.f32.mrb[0].mxu0
      %v549 = vadd.f32 0.0, %v548
      %v550 = vpop.f32.mrb[0].mxu0
      %551 = vmatprep.mubr.f32.mxu0 0.0
      %552 = vmatmul.mubr.f32.gmra.mrb[0].mxu0 %v430
      %v553 = vpop.f32.mrb[0].mxu0
      %v554 = vadd.f32 0.0, %v553
      %v555 = vpop.f32.mrb[0].mxu0
      %556 = vmatprep.mubr.f32.mxu0 0.0
      %557 = vmatmul.mubr.f32.gmra.mrb[0].mxu0 %v433
      %v558 = vpop.f32.mrb[0].mxu0
      %v559 = vadd.f32 0.0, %v558
      %v560 = vpop.f32.mrb[0].mxu0
      %561 = vmatprep.mubr.f32.mxu0 0.0
      %562 = vmatmul.mubr.f32.gmra.mrb[0].mxu0 %v436
      %v563 = vpop.f32.mrb[0].mxu0
      %v564 = vadd.f32 0.0, %v563
      %v565 = vpop.f32.mrb[0].mxu0
      %566 = vmatprep.mubr.f32.mxu0 0.0
      %567 = vmatmul.mubr.f32.gmra.mrb[0].mxu0 %v439
      %v568 = vpop.f32.mrb[0].mxu0
      %v569 = vadd.f32 0.0, %v568
      %v570 = vpop.f32.mrb[0].mxu0
      %571 = vmatprep.mubr.f32.mxu0 0.0
      %572 = vmatmul.mubr.f32.gmra.mrb[0].mxu0 %v442
      %v573 = vpop.f32.mrb[0].mxu0
      %v574 = vadd.f32 0.0, %v573
      %v575 = vpop.f32.mrb[0].mxu0
      %576 = vmatprep.mubr.f32.mxu0 0.0
      %577 = vmatmul.mubr.f32.gmra.mrb[0].mxu0 %v445
      %v578 = vpop.f32.mrb[0].mxu0
      %v579 = vadd.f32 0.0, %v578
      %v580 = vpop.f32.mrb[0].mxu0
      %581 = vmatprep.mubr.f32.mxu0 0.0
      %582 = vmatmul.mubr.f32.gmra.mrb[0].mxu0 %v448
      %v583 = vpop.f32.mrb[0].mxu0
      %v584 = vadd.f32 0.0, %v583
      %v585 = vpop.f32.mrb[0].mxu0
      %586 = vmatprep.mubr.f32.mxu0 0.0
      %587 = vmatmul.mubr.f32.gmra.mrb[0].mxu0 %v451
      %v588 = vpop.f32.mrb[0].mxu0
      %v589 = vadd.f32 0.0, %v588
      %v590 = vpop.f32.mrb[0].mxu0
      %591 = vmatprep.mubr.f32.mxu0 0.0
      %592 = vmatmul.mubr.f32.gmra.mrb[0].mxu0 %v454
      %v593 = vpop.f32.mrb[0].mxu0
      %v594 = vadd.f32 0.0, %v593
      %v595 = vpop.f32.mrb[0].mxu0
      %596 = vmatprep.mubr.f32.mxu0 0.0
      %597 = vmatmul.mubr.f32.gmra.mrb[0].mxu0 %v457
      %v598 = vpop.f32.mrb[0].mxu0
      %v599 = vadd.f32 0.0, %v598
      %v600 = vpop.f32.mrb[0].mxu0
      %601 = vmatprep.mubr.f32.mxu0 0.0
      %602 = vmatmul.mubr.f32.gmra.mrb[0].mxu0 %v460
      %v603 = vpop.f32.mrb[0].mxu0
      %v604 = vadd.f32 0.0, %v603
      %v605 = vpop.f32.mrb[0].mxu0
      %606 = vdwg.mxu0
      %v607 = vmul.f32 %v529, 0.125
      %v608 = vmul.f32 %v534, 0.125
      %v609 = vmul.f32 %v539, 0.125
      %v610 = vmul.f32 %v544, 0.125
      %v611 = vmul.f32 %v549, 0.125
      %v612 = vmul.f32 %v554, 0.125
      %v613 = vmul.f32 %v559, 0.125
      %v614 = vmul.f32 %v564, 0.125
      %v615 = vmul.f32 %v569, 0.125
      %v616 = vmul.f32 %v574, 0.125
      %v617 = vmul.f32 %v579, 0.125
      %v618 = vmul.f32 %v584, 0.125
      %v619 = vmul.f32 %v589, 0.125
      %v620 = vmul.f32 %v594, 0.125
      %v621 = vmul.f32 %v599, 0.125
      %v622 = vmul.f32 %v604, 0.125
      %623 = vst.msk [vmem:[#allocation3] sm:$0xff] %vm413, %v607
      %624 = vst.msk [vmem:[#allocation3 + $0x8] sm:$0xff] %vm413, %v608
      %625 = vst.msk [vmem:[#allocation3 + $0x10] sm:$0xff] %vm413, %v609
      %626 = vst.msk [vmem:[#allocation3 + $0x18] sm:$0xff] %vm413, %v610
      %627 = vst.msk [vmem:[#allocation3 + $0x20] sm:$0xff] %vm413, %v611
      %628 = vst.msk [vmem:[#allocation3 + $0x28] sm:$0xff] %vm413, %v612
      %629 = vst.msk [vmem:[#allocation3 + $0x30] sm:$0xff] %vm413, %v613
      %630 = vst.msk [vmem:[#allocation3 + $0x38] sm:$0xff] %vm413, %v614
      %631 = vst.msk [vmem:[#allocation3 + $0x40] sm:$0xff] %vm413, %v615
      %632 = vst.msk [vmem:[#allocation3 + $0x48] sm:$0xff] %vm413, %v616
      %633 = vst.msk [vmem:[#allocation3 + $0x50] sm:$0xff] %vm413, %v617
      %634 = vst.msk [vmem:[#allocation3 + $0x58] sm:$0xff] %vm413, %v618
      %635 = vst.msk [vmem:[#allocation3 + $0x60] sm:$0xff] %vm413, %v619
      %636 = vst.msk [vmem:[#allocation3 + $0x68] sm:$0xff] %vm413, %v620
      %637 = vst.msk [vmem:[#allocation3 + $0x70] sm:$0xff] %vm413, %v621
      %638 = vst.msk [vmem:[#allocation3 + $0x78] sm:$0xff] %vm413, %v622
      %v639 = vld [vmem:[#allocation4] sm:$0xff]
      %v640 = vld [vmem:[#allocation4 + $0x8] sm:$0xff]
      %v641 = vld [vmem:[#allocation4 + $0x10] sm:$0xff]
      %v642 = vld [vmem:[#allocation4 + $0x18] sm:$0xff]
      %v643 = vld [vmem:[#allocation4 + $0x20] sm:$0xff]
      %v644 = vld [vmem:[#allocation4 + $0x28] sm:$0xff]
      %v645 = vld [vmem:[#allocation4 + $0x30] sm:$0xff]
      %v646 = vld [vmem:[#allocation4 + $0x38] sm:$0xff]
      %v647 = vld [vmem:[#allocation4 + $0x40] sm:$0xff]
      %v648 = vld [vmem:[#allocation4 + $0x48] sm:$0xff]
      %v649 = vld [vmem:[#allocation4 + $0x50] sm:$0xff]
      %v650 = vld [vmem:[#allocation4 + $0x58] sm:$0xff]
      %v651 = vld [vmem:[#allocation4 + $0x60] sm:$0xff]
      %v652 = vld [vmem:[#allocation4 + $0x68] sm:$0xff]
      %v653 = vld [vmem:[#allocation4 + $0x70] sm:$0xff]
      %v654 = vld [vmem:[#allocation4 + $0x78] sm:$0xff]
      %v655 = vld [vmem:[#allocation3] sm:$0xff]
      %v656 = vld [vmem:[#allocation3 + $0x8] sm:$0xff]
      %v657 = vld [vmem:[#allocation3 + $0x10] sm:$0xff]
      %v658 = vld [vmem:[#allocation3 + $0x18] sm:$0xff]
      %v659 = vld [vmem:[#allocation3 + $0x20] sm:$0xff]
      %v660 = vld [vmem:[#allocation3 + $0x28] sm:$0xff]
      %v661 = vld [vmem:[#allocation3 + $0x30] sm:$0xff]
      %v662 = vld [vmem:[#allocation3 + $0x38] sm:$0xff]
      %v663 = vld [vmem:[#allocation3 + $0x40] sm:$0xff]
      %v664 = vld [vmem:[#allocation3 + $0x48] sm:$0xff]
      %v665 = vld [vmem:[#allocation3 + $0x50] sm:$0xff]
      %v666 = vld [vmem:[#allocation3 + $0x58] sm:$0xff]
      %v667 = vld [vmem:[#allocation3 + $0x60] sm:$0xff]
      %v668 = vld [vmem:[#allocation3 + $0x68] sm:$0xff]
      %v669 = vld [vmem:[#allocation3 + $0x70] sm:$0xff]
      %v670 = vld [vmem:[#allocation3 + $0x78] sm:$0xff]
      %672 = vset.pattern.permute.xlu0 0
      %673 = vperm.xlu0 %672, %v655
      %v674 = vpop.permute.xlu0 %673
      %677 = vset.pattern.permute.xlu0 0
      %678 = vperm.xlu0 %677, %v656
      %v679 = vpop.permute.xlu0 %678
      %682 = vset.pattern.permute.xlu0 0
      %683 = vperm.xlu0 %682, %v657
      %v684 = vpop.permute.xlu0 %683
      %687 = vset.pattern.permute.xlu0 0
      %688 = vperm.xlu0 %687, %v658
      %v689 = vpop.permute.xlu0 %688
      %692 = vset.pattern.permute.xlu0 0
      %693 = vperm.xlu0 %692, %v659
      %v694 = vpop.permute.xlu0 %693
      %697 = vset.pattern.permute.xlu0 0
      %698 = vperm.xlu0 %697, %v660
      %v699 = vpop.permute.xlu0 %698
      %702 = vset.pattern.permute.xlu0 0
      %703 = vperm.xlu0 %702, %v661
      %v704 = vpop.permute.xlu0 %703
      %707 = vset.pattern.permute.xlu0 0
      %708 = vperm.xlu0 %707, %v662
      %v709 = vpop.permute.xlu0 %708
      %712 = vset.pattern.permute.xlu0 0
      %713 = vperm.xlu0 %712, %v663
      %v714 = vpop.permute.xlu0 %713
      %717 = vset.pattern.permute.xlu0 0
      %718 = vperm.xlu0 %717, %v664
      %v719 = vpop.permute.xlu0 %718
      %722 = vset.pattern.permute.xlu0 0
      %723 = vperm.xlu0 %722, %v665
      %v724 = vpop.permute.xlu0 %723
      %727 = vset.pattern.permute.xlu0 0
      %728 = vperm.xlu0 %727, %v666
      %v729 = vpop.permute.xlu0 %728
      %732 = vset.pattern.permute.xlu0 0
      %733 = vperm.xlu0 %732, %v667
      %v734 = vpop.permute.xlu0 %733
      %737 = vset.pattern.permute.xlu0 0
      %738 = vperm.xlu0 %737, %v668
      %v739 = vpop.permute.xlu0 %738
      %742 = vset.pattern.permute.xlu0 0
      %743 = vperm.xlu0 %742, %v669
      %v744 = vpop.permute.xlu0 %743
      %747 = vset.pattern.permute.xlu0 0
      %748 = vperm.xlu0 %747, %v670
      %v749 = vpop.permute.xlu0 %748
      %v751 = vlaneseq
      %v752 = vshrl.u32 %v751, 7
      %v753 = vsub.s32 0, %v752
      %v754 = vrot.slane %v356, %v753
      %v755 = vmul.f32 %v674, %v754
      %v756 = vmul.f32 %v679, %v754
      %v757 = vmul.f32 %v684, %v754
      %v758 = vmul.f32 %v689, %v754
      %v759 = vmul.f32 %v694, %v754
      %v760 = vmul.f32 %v699, %v754
      %v761 = vmul.f32 %v704, %v754
      %v762 = vmul.f32 %v709, %v754
      %v763 = vmul.f32 %v714, %v754
      %v764 = vmul.f32 %v719, %v754
      %v765 = vmul.f32 %v724, %v754
      %v766 = vmul.f32 %v729, %v754
      %v767 = vmul.f32 %v734, %v754
      %v768 = vmul.f32 %v739, %v754
      %v769 = vmul.f32 %v744, %v754
      %v770 = vmul.f32 %v749, %v754
      %771 = vset.pattern.permute.xlu0 1
      %772 = vperm.xlu0 %771, %v655
      %v773 = vpop.permute.xlu0 %772
      %775 = vset.pattern.permute.xlu0 1
      %776 = vperm.xlu0 %775, %v656
      %v777 = vpop.permute.xlu0 %776
      %779 = vset.pattern.permute.xlu0 1
      %780 = vperm.xlu0 %779, %v657
      %v781 = vpop.permute.xlu0 %780
      %783 = vset.pattern.permute.xlu0 1
      %784 = vperm.xlu0 %783, %v658
      %v785 = vpop.permute.xlu0 %784
      %787 = vset.pattern.permute.xlu0 1
      %788 = vperm.xlu0 %787, %v659
      %v789 = vpop.permute.xlu0 %788
      %791 = vset.pattern.permute.xlu0 1
      %792 = vperm.xlu0 %791, %v660
      %v793 = vpop.permute.xlu0 %792
      %795 = vset.pattern.permute.xlu0 1
      %796 = vperm.xlu0 %795, %v661
      %v797 = vpop.permute.xlu0 %796
      %799 = vset.pattern.permute.xlu0 1
      %800 = vperm.xlu0 %799, %v662
      %v801 = vpop.permute.xlu0 %800
      %803 = vset.pattern.permute.xlu0 1
      %804 = vperm.xlu0 %803, %v663
      %v805 = vpop.permute.xlu0 %804
      %807 = vset.pattern.permute.xlu0 1
      %808 = vperm.xlu0 %807, %v664
      %v809 = vpop.permute.xlu0 %808
      %811 = vset.pattern.permute.xlu0 1
      %812 = vperm.xlu0 %811, %v665
      %v813 = vpop.permute.xlu0 %812
      %815 = vset.pattern.permute.xlu0 1
      %816 = vperm.xlu0 %815, %v666
      %v817 = vpop.permute.xlu0 %816
      %819 = vset.pattern.permute.xlu0 1
      %820 = vperm.xlu0 %819, %v667
      %v821 = vpop.permute.xlu0 %820
      %823 = vset.pattern.permute.xlu0 1
      %824 = vperm.xlu0 %823, %v668
      %v825 = vpop.permute.xlu0 %824
      %827 = vset.pattern.permute.xlu0 1
      %828 = vperm.xlu0 %827, %v669
      %v829 = vpop.permute.xlu0 %828
      %831 = vset.pattern.permute.xlu0 1
      %832 = vperm.xlu0 %831, %v670
      %v833 = vpop.permute.xlu0 %832
      %v835 = vlaneseq
      %v836 = vshrl.u32 %v835, 7
      %v837 = vsub.s32 0, %v836
      %v838 = vrot.slane %v358, %v837
      %v839 = vmul.f32 %v773, %v838
      %v840 = vmul.f32 %v777, %v838
      %v841 = vmul.f32 %v781, %v838
      %v842 = vmul.f32 %v785, %v838
      %v843 = vmul.f32 %v789, %v838
      %v844 = vmul.f32 %v793, %v838
      %v845 = vmul.f32 %v797, %v838
      %v846 = vmul.f32 %v801, %v838
      %v847 = vmul.f32 %v805, %v838
      %v848 = vmul.f32 %v809, %v838
      %v849 = vmul.f32 %v813, %v838
      %v850 = vmul.f32 %v817, %v838
      %v851 = vmul.f32 %v821, %v838
      %v852 = vmul.f32 %v825, %v838
      %v853 = vmul.f32 %v829, %v838
      %v854 = vmul.f32 %v833, %v838
      %v855 = vsub.f32 %v755, %v839
      %v856 = vsub.f32 %v756, %v840
      %v857 = vsub.f32 %v757, %v841
      %v858 = vsub.f32 %v758, %v842
      %v859 = vsub.f32 %v759, %v843
      %v860 = vsub.f32 %v760, %v844
      %v861 = vsub.f32 %v761, %v845
      %v862 = vsub.f32 %v762, %v846
      %v863 = vsub.f32 %v763, %v847
      %v864 = vsub.f32 %v764, %v848
      %v865 = vsub.f32 %v765, %v849
      %v866 = vsub.f32 %v766, %v850
      %v867 = vsub.f32 %v767, %v851
      %v868 = vsub.f32 %v768, %v852
      %v869 = vsub.f32 %v769, %v853
      %v870 = vsub.f32 %v770, %v854
      %v871 = vmul.f32 %v855, 8.0
      %v872 = vmul.f32 %v856, 8.0
      %v873 = vmul.f32 %v857, 8.0
      %v874 = vmul.f32 %v858, 8.0
      %v875 = vmul.f32 %v859, 8.0
      %v876 = vmul.f32 %v860, 8.0
      %v877 = vmul.f32 %v861, 8.0
      %v878 = vmul.f32 %v862, 8.0
      %v879 = vmul.f32 %v863, 8.0
      %v880 = vmul.f32 %v864, 8.0
      %v881 = vmul.f32 %v865, 8.0
      %v882 = vmul.f32 %v866, 8.0
      %v883 = vmul.f32 %v867, 8.0
      %v884 = vmul.f32 %v868, 8.0
      %v885 = vmul.f32 %v869, 8.0
      %v886 = vmul.f32 %v870, 8.0
      %v887 = vsub.f32 %v639, %v871
      %v888 = vsub.f32 %v640, %v872
      %v889 = vsub.f32 %v641, %v873
      %v890 = vsub.f32 %v642, %v874
      %v891 = vsub.f32 %v643, %v875
      %v892 = vsub.f32 %v644, %v876
      %v893 = vsub.f32 %v645, %v877
      %v894 = vsub.f32 %v646, %v878
      %v895 = vsub.f32 %v647, %v879
      %v896 = vsub.f32 %v648, %v880
      %v897 = vsub.f32 %v649, %v881
      %v898 = vsub.f32 %v650, %v882
      %v899 = vsub.f32 %v651, %v883
      %v900 = vsub.f32 %v652, %v884
      %v901 = vsub.f32 %v653, %v885
      %v902 = vsub.f32 %v654, %v886
      %v903 = vmul.f32 %v887, %v887
      %v904 = vmul.f32 %v888, %v888
      %v905 = vmul.f32 %v889, %v889
      %v906 = vmul.f32 %v890, %v890
      %v907 = vmul.f32 %v891, %v891
      %v908 = vmul.f32 %v892, %v892
      %v909 = vmul.f32 %v893, %v893
      %v910 = vmul.f32 %v894, %v894
      %v911 = vmul.f32 %v895, %v895
      %v912 = vmul.f32 %v896, %v896
      %v913 = vmul.f32 %v897, %v897
      %v914 = vmul.f32 %v898, %v898
      %v915 = vmul.f32 %v899, %v899
      %v916 = vmul.f32 %v900, %v900
      %v917 = vmul.f32 %v901, %v901
      %v918 = vmul.f32 %v902, %v902
      %v919 = vadd.f32 %v903, %v904
      %v920 = vadd.f32 %v919, %v905
      %v921 = vadd.f32 %v920, %v906
      %v922 = vadd.f32 %v921, %v907
      %v923 = vadd.f32 %v922, %v908
      %v924 = vadd.f32 %v923, %v909
      %v925 = vadd.f32 %v924, %v910
      %v926 = vadd.f32 %v925, %v911
      %v927 = vadd.f32 %v926, %v912
      %v928 = vadd.f32 %v927, %v913
      %v929 = vadd.f32 %v928, %v914
      %v930 = vadd.f32 %v929, %v915
      %v931 = vadd.f32 %v930, %v916
      %v932 = vadd.f32 %v931, %v917
      %v933 = vadd.f32 %v932, %v918
      %934 = vadd.xlane.f32.xlu0 %v933
      %v935 = vpop.xlane.xlu0 %934
      %v936 = vrot.slane %v935, 4
      %v937 = vadd.f32 %v935, %v936
      %v938 = vrot.slane %v937, 2
      %v939 = vadd.f32 %v937, %v938
      %v940 = vrot.slane %v939, 1
      %v941 = vadd.f32 %v939, %v940
      %s942 = vtos %v941
      %v943 = vstv %s942
      %v944 = vadd.f32 %v943, 0.0
      %s945 = vtos %v944
      %s946 = smul.f32 %s945, 1.9929847e-05
      %s947 = sadd.f32 %s372, %s946
      %s948 = scalar_lea.smem [#allocation10], 0
      %949 = sst [smem:[%s948]] %s947
    $region25: #{tpu_custom_call.1} parent=1 // pred_fallthru
      _
    // Predicated region
    $region26: #{tpu_custom_call.1} parent=1 // pred_check
      _
    $region27: #{tpu_custom_call.1} parent=1 // pred_check_branch
      %951 = sbr.rel (0) target = $region29
    $region28: #{tpu_custom_call.1} parent=1 // pred_region
      %s953 = ssub.s32 16, 16
      %954 = vsyncadd [#allocation7], %s953
      %957 = dma.smem_to_hbm [#allocation10], 16, %s2, [#allocation7]
    $region29: #{tpu_custom_call.1} parent=1 // pred_fallthru
      _
    // Predicated region
    $region30: #{tpu_custom_call.1} parent=1 // pred_check
      _
    $region31: #{tpu_custom_call.1} parent=1 // pred_check_branch
      %959 = sbr.rel (0) target = $region33
    $region32: #{tpu_custom_call.1} parent=1 // pred_region
      %960 = dma.done [#allocation7], 16
    $region33: #{tpu_custom_call.1} parent=1 // pred_fallthru
      _
    %961 = sfence
    %962 = vsyncpa [#allocation6], 1
    %963 = vsyncpa [#allocation9], 1
    %964 = vsyncpa [#allocation7], 1

</llo_original>
